<compile_context>
chip_gen: v7x
topology: tpu7x:2x2x1
jax: 0.10.0
libtpu: 0.0.40
codegen_flags: <defaults>
</compile_context>

<pallas_src>
import functools

import jax
import jax.numpy as jnp
from jax.experimental import pallas as pl
from jax.experimental.pallas import tpu as pltpu


def _int_pow(v, n: int):
    """v**n for a small static non-negative integer n via repeated squaring
    (VPU multiplies only — no EUP exp/log)."""
    assert n >= 0
    if n == 0:
        return jnp.ones_like(v)
    out = None
    base = v
    while n > 0:
        if n & 1:
            out = base if out is None else out * base
        n >>= 1
        if n:
            base = base * base
    return out


def _asl_kernel(x_ref, y_ref, out_ref, *, gamma_neg, gamma_pos, clip, eps,
                num_rows, slab_rows, num_row_blocks):
    i = pl.program_id(0)
    blk_rows, blk_cols = x_ref.shape
    n_slabs = blk_rows // slab_rows  # static

    def slab_partial(r0, rows_left=None):
        """ASL for rows [r0, r0+slab_rows) of this block, reduced to a
        lane-dense (8, 128) f32 partial sum."""
        x = x_ref[pl.ds(r0, slab_rows), :].astype(jnp.float32)
        y = y_ref[pl.ds(r0, slab_rows), :]
        # Predicate in y's native dtype — y is only ever used as a gate.
        is_pos = y if y.dtype == jnp.bool_ else (y > 0)

        # sigmoid(x) = 0.5 * tanh(0.5 * x) + 0.5 : a single EUP transcendental.
        xs_pos = 0.5 * jnp.tanh(0.5 * x) + 0.5
        xs_neg = 1.0 - xs_pos
        # Asymmetric clipping (probability shift on the negative side).
        if clip is not None and clip > 0:
            xs_neg = jnp.minimum(xs_neg + clip, 1.0)

        # Binarized targets (y in {0, 1}): the y-weighted blends collapse to
        # selects, and the cross-entropy term needs a single log per element:
        #   y*log(xs_pos) + (1-y)*log(xs_neg) == log(p_sel).
        p_sel = jnp.where(is_pos, xs_pos, xs_neg)
        loss = jnp.log(jnp.maximum(p_sel, eps))

        # Asymmetric focusing: (1 - pt)**gamma with pt == p_sel for binary y.
        gp, gn = float(gamma_pos), float(gamma_neg)
        if gp > 0 or gn > 0:
            one_minus_pt = 1.0 - p_sel
            if gp.is_integer() and gn.is_integer() and gp >= 0 and gn >= 0:
                # Integer gammas (defaults 1 / 4): pure VPU multiplies.
                w = jnp.where(is_pos,
                              _int_pow(one_minus_pt, int(gp)),
                              _int_pow(one_minus_pt, int(gn)))
            else:
                gamma = jnp.where(is_pos, gp, gn)
                w = jnp.power(one_minus_pt, gamma)
            loss = loss * w
            # TODO(synk): disable_torch_grad_focal_loss only affects autodiff
            # (stop_gradient on the focal weight); forward is identical.

        if rows_left is not None:
            # Ragged-tail mask: cheap (slab_rows, 1) sublane iota broadcast
            # along lanes; only emitted on the last row block (see pl.when).
            row_ids = jax.lax.broadcasted_iota(jnp.int32, (slab_rows, 1), 0)
            loss = jnp.where(row_ids < rows_left, loss, 0.0)

        # Rows -> (8, blk_cols): sublane-group reduction (layout preserving).
        red = loss.reshape(slab_rows // 8, 8, blk_cols).sum(axis=0)
        # Lanes -> (8, 128): unrolled 128-lane slice adds (no relayout).
        if blk_cols % 128 == 0:
            partial = red[:, :128]
            for k in range(1, blk_cols // 128):
                partial = partial + red[:, k * 128:(k + 1) * 128]
        else:
            # Generic fallback for awkward C: scalar reduce into element [0,0].
            s = jnp.sum(red)
            rm = jax.lax.broadcasted_iota(jnp.int32, (8, 128), 0) == 0
            cm = jax.lax.broadcasted_iota(jnp.int32, (8, 128), 1) == 0
            partial = jnp.where(rm & cm, s, 0.0)
        return partial

    def block_partial(masked):
        if n_slabs == 1:
            if masked:
                return slab_partial(0, rows_left=num_rows - i * blk_rows)
            return slab_partial(0)

        def body(s, acc):
            r0 = pl.multiple_of(s * slab_rows, slab_rows)
            if masked:
                rows_left = num_rows - i * blk_rows - r0
                return acc + slab_partial(r0, rows_left=rows_left)
            return acc + slab_partial(r0)

        return jax.lax.fori_loop(0, n_slabs, body,
                                 jnp.zeros((8, 128), jnp.float32))

    has_row_tail = (num_rows % blk_rows) != 0
    if not has_row_tail:
        out_ref[...] = block_partial(masked=False)
    elif num_row_blocks == 1:
        out_ref[...] = block_partial(masked=True)
    else:
        # Only the last row block pays the masking VPU cost.
        @pl.when(i < num_row_blocks - 1)
        def _():
            out_ref[...] = block_partial(masked=False)

        @pl.when(i == num_row_blocks - 1)
        def _():
            out_ref[...] = block_partial(masked=True)


def _tpu_budget(target_block_bytes, vmem_limit_bytes):
    """Generation-aware block / VMEM-limit defaults."""
    vmem_cap = None
    try:
        info = pltpu.get_tpu_info()
        vmem_cap = getattr(info, "vmem_capacity_bytes", None)
    except Exception:
        vmem_cap = None
    # v7x-class parts have 64 MiB VMEM per TensorCore; v5e/v6e have 128 MiB.
    small_vmem = (vmem_cap is None) or (vmem_cap < 100 * 1024 * 1024)
    if target_block_bytes is None:
        target_block_bytes = (8 if small_vmem else 16) * 1024 * 1024
    if vmem_limit_bytes is None:
        vmem_limit_bytes = (56 if small_vmem else 96) * 1024 * 1024
    return target_block_bytes, vmem_limit_bytes, small_vmem


def asymmetric_loss(x, y, *, gamma_neg=4, gamma_pos=1, clip=0.05, eps=1e-8,
                    target_block_bytes=None, vmem_limit_bytes=None):
    """Forward pass of AsymmetricLoss.

    x: [B, C] logits (f32 or bf16; bf16 halves HBM traffic, math stays f32).
    y: [B, C] *binarized* multi-label targets (must be in {0, 1}); may be
       float, bf16, int8, or bool — int8/bool targets are DMA'd at 1 byte/elem.
    """
    assert x.shape == y.shape and x.ndim == 2
    B, C = x.shape
    if y.dtype == jnp.bool_:
        y = y.astype(jnp.int8)  # 1 byte/elem; kernel only uses y as a predicate

    target_block_bytes, vmem_limit_bytes, small_vmem = _tpu_budget(
        target_block_bytes, vmem_limit_bytes)

    x_item = jnp.dtype(x.dtype).itemsize
    y_item = jnp.dtype(y.dtype).itemsize
    # Row granularity must respect the packed-sublane tiling of the narrowest
    # input dtype (f32 -> 8, bf16 -> 16, int8 -> 32 rows).
    row_align = max(8, 32 // x_item, 32 // y_item)

    # Column (class) tiling: only when even a minimal row block of the full C
    # exceeds the per-input budget and C is 128-aligned; the chosen width
    # always divides C exactly, so no lane masking is ever needed.
    # TODO(synk): tile ragged C (C % 128 != 0) with a lane mask on the last
    # column block for extremely wide, non-aligned class counts.
    block_cols = C
    if C % 128 == 0 and row_align * C * x_item > target_block_bytes:
        units = C // 128
        max_units = max(1, target_block_bytes // (row_align * 128 * x_item))
        best = 1
        for d in range(1, units + 1):
            if units % d == 0 and d <= max_units:
                best = d
        block_cols = best * 128
    num_col_blocks = C // block_cols

    # Row-slab size: bounds live f32 temporaries inside the kernel to ~2 MiB
    # per temp regardless of the (much larger) DMA block.
    slab_budget_f32 = 2 * 1024 * 1024
    rows_cap = pl.cdiv(B, row_align) * row_align
    slab_rows = min(256, max(row_align, slab_budget_f32 // (block_cols * 4)))
    slab_rows = max(row_align, (slab_rows // row_align) * row_align)
    slab_rows = min(slab_rows, rows_cap)

    # Row-block size: as close to target_block_bytes per input as possible,
    # a multiple of slab_rows, and no larger than needed to cover B.
    rows_for_target = max(slab_rows,
                          target_block_bytes // (block_cols * x_item))
    block_rows = max(slab_rows, (rows_for_target // slab_rows) * slab_rows)
    rows_needed = pl.cdiv(B, slab_rows) * slab_rows
    block_rows = min(block_rows, rows_needed)
    num_row_blocks = pl.cdiv(B, block_rows)

    # On dual-TensorCore parts (v7x), prefer an even number of row blocks so
    # the "parallel" grid axis load-balances across both cores.
    if small_vmem and num_row_blocks > 1 and num_row_blocks % 2 == 1:
        cand = max(slab_rows,
                   pl.cdiv(pl.cdiv(B, num_row_blocks + 1), slab_rows)
                   * slab_rows)
        if pl.cdiv(B, cand) % 2 == 0:
            block_rows = cand
            num_row_blocks = pl.cdiv(B, cand)

    kernel = functools.partial(
        _asl_kernel,
        gamma_neg=gamma_neg, gamma_pos=gamma_pos, clip=clip, eps=eps,
        num_rows=B, slab_rows=slab_rows, num_row_blocks=num_row_blocks)

    partials = pl.pallas_call(
        kernel,
        out_shape=jax.ShapeDtypeStruct(
            (num_row_blocks * 8, num_col_blocks * 128), jnp.float32),
        grid_spec=pltpu.PrefetchScalarGridSpec(
            num_scalar_prefetch=0,
            grid=(num_row_blocks, num_col_blocks),
            in_specs=[
                pl.BlockSpec((block_rows, block_cols), lambda i, j: (i, j)),
                pl.BlockSpec((block_rows, block_cols), lambda i, j: (i, j)),
            ],
            out_specs=pl.BlockSpec((8, 128), lambda i, j: (i, j)),
        ),
        compiler_params=pltpu.CompilerParams(
            # Independent per-block partials -> fully parallel grid
            # (lets v7x split blocks across both TensorCores).
            dimension_semantics=("parallel", "parallel"),
            vmem_limit_bytes=vmem_limit_bytes,
        ),
    )(x, y)

    # Tiny final reduction + negation outside the kernel.
    return -jnp.sum(partials)


def asymmetric_loss_ref(x, y, *, gamma_neg=4, gamma_pos=1, clip=0.05, eps=1e-8):
    """Pure-JAX reference mirroring the PyTorch forward exactly."""
    xs_pos = jax.nn.sigmoid(x)
    xs_neg = 1.0 - xs_pos
    if clip is not None and clip > 0:
        xs_neg = jnp.minimum(xs_neg + clip, 1.0)
    los_pos = y * jnp.log(jnp.maximum(xs_pos, eps))
    los_neg = (1.0 - y) * jnp.log(jnp.maximum(xs_neg, eps))
    loss = los_pos + los_neg
    if gamma_neg > 0 or gamma_pos > 0:
        pt = xs_pos * y + xs_neg * (1.0 - y)
        gamma = gamma_pos * y + gamma_neg * (1.0 - y)
        loss = loss * jnp.power(1.0 - pt, gamma)
    return -jnp.sum(loss)


if __name__ == "__main__":
    key = jax.random.PRNGKey(0)
    kx, ky = jax.random.split(key)

    # Small multi-label problem: 16 samples, 256 classes (float targets).
    B, C = 16, 256
    x = jax.random.normal(kx, (B, C), dtype=jnp.float32)
    y = (jax.random.uniform(ky, (B, C)) < 0.1).astype(jnp.float32)

    out = jax.block_until_ready(asymmetric_loss(x, y))
    ref = asymmetric_loss_ref(x, y)
    assert jnp.allclose(out, ref, rtol=1e-4, atol=1e-3), (out, ref)

    # int8 targets: same semantics, 1 byte/elem of HBM traffic for y.
    kx2, ky2 = jax.random.split(ky)
    B2, C2 = 64, 256
    x2 = jax.random.normal(kx2, (B2, C2), dtype=jnp.float32)
    y2 = (jax.random.uniform(ky2, (B2, C2)) < 0.1).astype(jnp.int8)
    out2 = jax.block_until_ready(asymmetric_loss(x2, y2))
    ref2 = asymmetric_loss_ref(x2, y2.astype(jnp.float32))
    assert jnp.allclose(out2, ref2, rtol=1e-4, atol=1e-3), (out2, ref2)

    print("KERNEL_OK")
</pallas_src>

<mosaic_0001>
module attributes {stable_mosaic.version = 11 : i64} {
  func.func @_asl_kernel(%arg0: i32, %arg1: i32, %arg2: memref<16x256xf32, #tpu.memory_space<vmem>>, %arg3: memref<16x256xf32, #tpu.memory_space<vmem>>, %arg4: memref<8x128xf32, #tpu.memory_space<vmem>>) attributes {dimension_semantics = [#tpu.dimension_semantics<parallel>, #tpu.dimension_semantics<parallel>], iteration_bounds = array<i64: 1, 1>, scalar_prefetch = 0 : i64, scratch_operands = 0 : i64, tpu.core_type = #tpu.core_type<tc>, window_params = [{transform_indices = @transform_0, window_bounds = array<i64: 16, 256>}, {transform_indices = @transform_1, window_bounds = array<i64: 16, 256>}, {transform_indices = @transform_2, window_bounds = array<i64: 8, 128>}]} {
    %c0 = arith.constant 0 : index
    %c0_0 = arith.constant 0 : index
    %0 = vector.load %arg2[%c0, %c0_0] : memref<16x256xf32, #tpu.memory_space<vmem>>, vector<16x256xf32>
    %c0_1 = arith.constant 0 : index
    %c0_2 = arith.constant 0 : index
    %1 = vector.load %arg3[%c0_1, %c0_2] : memref<16x256xf32, #tpu.memory_space<vmem>>, vector<16x256xf32>
    %cst = arith.constant 0.000000e+00 : f32
    %2 = vector.broadcast %cst : f32 to vector<16x256xf32>
    %3 = arith.cmpf ogt, %1, %2 : vector<16x256xf32>
    %cst_3 = arith.constant 5.000000e-01 : f32
    %4 = vector.broadcast %cst_3 : f32 to vector<16x256xf32>
    %5 = arith.mulf %4, %0 : vector<16x256xf32>
    %6 = math.tanh %5 : vector<16x256xf32>
    %cst_4 = arith.constant 5.000000e-01 : f32
    %7 = vector.broadcast %cst_4 : f32 to vector<16x256xf32>
    %8 = arith.mulf %7, %6 : vector<16x256xf32>
    %cst_5 = arith.constant 5.000000e-01 : f32
    %9 = vector.broadcast %cst_5 : f32 to vector<16x256xf32>
    %10 = arith.addf %8, %9 : vector<16x256xf32>
    %cst_6 = arith.constant 1.000000e+00 : f32
    %11 = vector.broadcast %cst_6 : f32 to vector<16x256xf32>
    %12 = arith.subf %11, %10 : vector<16x256xf32>
    %cst_7 = arith.constant 5.000000e-02 : f32
    %13 = vector.broadcast %cst_7 : f32 to vector<16x256xf32>
    %14 = arith.addf %12, %13 : vector<16x256xf32>
    %cst_8 = arith.constant 1.000000e+00 : f32
    %15 = vector.broadcast %cst_8 : f32 to vector<16x256xf32>
    %16 = arith.minimumf %14, %15 : vector<16x256xf32>
    %17 = arith.select %3, %10, %16 : vector<16x256xi1>, vector<16x256xf32>
    %cst_9 = arith.constant 9.99999993E-9 : f32
    %18 = vector.broadcast %cst_9 : f32 to vector<16x256xf32>
    %19 = arith.maximumf %17, %18 : vector<16x256xf32>
    %20 = math.log %19 : vector<16x256xf32>
    %cst_10 = arith.constant 1.000000e+00 : f32
    %21 = vector.broadcast %cst_10 : f32 to vector<16x256xf32>
    %22 = arith.subf %21, %17 : vector<16x256xf32>
    %23 = arith.mulf %22, %22 : vector<16x256xf32>
    %24 = arith.mulf %23, %23 : vector<16x256xf32>
    %25 = arith.select %3, %22, %24 : vector<16x256xi1>, vector<16x256xf32>
    %26 = arith.mulf %20, %25 : vector<16x256xf32>
    %27 = vector.shape_cast %26 : vector<16x256xf32> to vector<2x8x256xf32>
    %cst_11 = arith.constant dense<0.000000e+00> : vector<8x256xf32>
    %28 = vector.multi_reduction <add>, %27, %cst_11 [0] : vector<2x8x256xf32> to vector<8x256xf32>
    %29 = vector.extract_strided_slice %28 {offsets = [0, 0], sizes = [8, 128], strides = [1, 1]} : vector<8x256xf32> to vector<8x128xf32>
    %30 = vector.extract_strided_slice %28 {offsets = [0, 128], sizes = [8, 128], strides = [1, 1]} : vector<8x256xf32> to vector<8x128xf32>
    %31 = arith.addf %29, %30 : vector<8x128xf32>
    %c0_12 = arith.constant 0 : index
    %c0_13 = arith.constant 0 : index
    %32 = vector.load %arg4[%c0_12, %c0_13] : memref<8x128xf32, #tpu.memory_space<vmem>>, vector<8x128xf32>
    tpu.vector_store %arg4[%c0_12, %c0_13], %31 {strides = array<i32>} : memref<8x128xf32, #tpu.memory_space<vmem>>, vector<8x128xf32>,
    return
  }
  func.func @transform_0(%arg0: i32, %arg1: i32) -> (i32, i32) {
    %c0_i32 = arith.constant 0 : i32
    return %arg0, %arg1 : i32, i32
  }
  func.func @transform_1(%arg0: i32, %arg1: i32) -> (i32, i32) {
    %c0_i32 = arith.constant 0 : i32
    return %arg0, %arg1 : i32, i32
  }
  func.func @transform_2(%arg0: i32, %arg1: i32) -> (i32, i32) {
    %c0_i32 = arith.constant 0 : i32
    return %arg0, %arg1 : i32, i32
  }
}

</mosaic_0001>

<llo_original>
// kernel: tpu_custom_call.1
$region0: #{tpu_custom_call.1}
  #allocation0 [shape = 'u32[]', space=smem, size = 0x4, offset = 0x4, fixed_abs, tag = 'smem constant byte address 0x4 - core index']
  #allocation1 [shape = 'u32[144,128]{1,0:T(1,128)}', space=vmem, size = 0x12000, scoped, tag = 'internal scratch']
  %s0 = inlined_call_operand.hbm [shape: f32[16,256], index: 0, kind: input, shape index: {}]
  %s1 = inlined_call_operand.hbm [shape: f32[16,256], index: 1, kind: input, shape index: {}]
  %s2 = inlined_call_operand.hbm [shape: f32[8,128], index: 2, kind: output, shape index: {}]
  %s3 = sld [smem:[#allocation0]]
  $region26: #{tpu_custom_call.1} parent=0
    _
  %s5 = ssub.s32 1, %s3
  %s6 = scalar_select 0, %s5, %s3
  $region1: #{tpu_custom_call.1} parent=0
    #allocation2 [shape = 'u8[16384]{0}', space=vmem, size = 0x4000, scoped, tag = 'input window, operand 0, single buffered']
    #allocation3 [shape = 's32[1]{0}', space=sflag, size = 0x4, scoped, tag = 'scoped memory for tpu_custom_call.1']
    #allocation4 [shape = 's32[1]{0}', space=sflag, size = 0x4, scoped, tag = 'scoped memory for tpu_custom_call.1']
    #allocation5 [shape = 'u8[16384]{0}', space=vmem, size = 0x4000, scoped, tag = 'input window, operand 1, single buffered']
    #allocation6 [shape = 's32[1]{0}', space=sflag, size = 0x4, scoped, tag = 'scoped memory for tpu_custom_call.1']
    #allocation7 [shape = 'u8[4096]{0}', space=vmem, size = 0x1000, scoped, tag = 'output window, operand 0, single buffered']
    %7 = vsyncpa [#allocation3], 0
    %8 = vsyncpa [#allocation6], 0
    %9 = vsyncpa [#allocation4], 0
    // Predicated region
    $region2: #{tpu_custom_call.1} parent=1 // pred_check
      _
    $region3: #{tpu_custom_call.1} parent=1 // pred_check_branch
      %11 = sbr.rel (0) target = $region5
    $region4: #{tpu_custom_call.1} parent=1 // pred_region
      %s13 = ssub.s32 512, 512
      %14 = vsyncadd [#allocation3], %s13
      %s15 = sshll.u32 [#allocation2], 4
      %s16 = int_to_ptr.vmem [resolvable:$true] %s15
      %21 = dma.hbm_to_vmem [thread:$0]  %s0, 512, %s16, [#allocation3], 256, 256, 16
    $region5: #{tpu_custom_call.1} parent=1 // pred_fallthru
      _
    // Predicated region
    $region6: #{tpu_custom_call.1} parent=1 // pred_check
      _
    $region7: #{tpu_custom_call.1} parent=1 // pred_check_branch
      %23 = sbr.rel (0) target = $region9
    $region8: #{tpu_custom_call.1} parent=1 // pred_region
      %s25 = ssub.s32 512, 512
      %26 = vsyncadd [#allocation6], %s25
      %s27 = sshll.u32 [#allocation5], 4
      %s28 = int_to_ptr.vmem [resolvable:$true] %s27
      %33 = dma.hbm_to_vmem [thread:$0]  %s1, 512, %s28, [#allocation6], 256, 256, 16
    $region9: #{tpu_custom_call.1} parent=1 // pred_fallthru
      _
    // Predicated region
    $region10: #{tpu_custom_call.1} parent=1 // pred_check
      _
    $region11: #{tpu_custom_call.1} parent=1 // pred_check_branch
      %35 = sbr.rel (0) target = $region13
    $region12: #{tpu_custom_call.1} parent=1 // pred_region
      %36 = dma.done [#allocation3], 512
    $region13: #{tpu_custom_call.1} parent=1 // pred_fallthru
      _
    // Predicated region
    $region14: #{tpu_custom_call.1} parent=1 // pred_check
      _
    $region15: #{tpu_custom_call.1} parent=1 // pred_check_branch
      %38 = sbr.rel (0) target = $region17
    $region16: #{tpu_custom_call.1} parent=1 // pred_region
      %39 = dma.done [#allocation6], 512
    $region17: #{tpu_custom_call.1} parent=1 // pred_fallthru
      _
    %v40 = vld [vmem:[#allocation2] sm:$0xff]
    %v41 = vld [vmem:[#allocation2 + $0x8] sm:$0xff]
    %v42 = vld [vmem:[#allocation2 + $0x10] sm:$0xff]
    %v43 = vld [vmem:[#allocation2 + $0x18] sm:$0xff]
    %v44 = vld [vmem:[#allocation5] sm:$0xff]
    %v45 = vld [vmem:[#allocation5 + $0x8] sm:$0xff]
    %v46 = vld [vmem:[#allocation5 + $0x10] sm:$0xff]
    %v47 = vld [vmem:[#allocation5 + $0x18] sm:$0xff]
    %vm48 = vcmp.gt.f32.partialorder %v44, 0.0
    %vm49 = vcmp.gt.f32.partialorder %v45, 0.0
    %vm50 = vcmp.gt.f32.partialorder %v46, 0.0
    %vm51 = vcmp.gt.f32.partialorder %v47, 0.0
    %v52 = vmul.f32 %v40, 0.5
    %v53 = vmul.f32 %v41, 0.5
    %v54 = vmul.f32 %v42, 0.5
    %v55 = vmul.f32 %v43, 0.5
    %v56 = vtanh.pop %v52
    %v57 = vtanh.pop %v53
    %v58 = vtanh.pop %v54
    %v59 = vtanh.pop %v55
    %v60 = vmul.f32 %v56, 0.5
    %v61 = vmul.f32 %v57, 0.5
    %v62 = vmul.f32 %v58, 0.5
    %v63 = vmul.f32 %v59, 0.5
    %v64 = vadd.f32 %v60, 0.5
    %v65 = vadd.f32 %v61, 0.5
    %v66 = vadd.f32 %v62, 0.5
    %v67 = vadd.f32 %v63, 0.5
    %v68 = vsub.f32 1.0, %v64
    %v69 = vsub.f32 1.0, %v65
    %v70 = vsub.f32 1.0, %v66
    %v71 = vsub.f32 1.0, %v67
    %v72 = vadd.f32 %v68, 0.05
    %v73 = vadd.f32 %v69, 0.05
    %v74 = vadd.f32 %v70, 0.05
    %v75 = vadd.f32 %v71, 0.05
    %v76 = vmin.f32 %v72, 1.0
    %v77 = vmin.f32 %v73, 1.0
    %v78 = vmin.f32 %v74, 1.0
    %v79 = vmin.f32 %v75, 1.0
    %v80 = vsel %vm48, %v64, %v76
    %v81 = vsel %vm49, %v65, %v77
    %v82 = vsel %vm50, %v66, %v78
    %v83 = vsel %vm51, %v67, %v79
    %v84 = vmax.f32 %v80, 1e-08
    %v85 = vmax.f32 %v81, 1e-08
    %v86 = vmax.f32 %v82, 1e-08
    %v87 = vmax.f32 %v83, 1e-08
    %v88 = vlog2.pop %v84
    %v89 = vmul.f32 %v88, 0.6931472
    %v90 = vlog2.pop %v85
    %v91 = vmul.f32 %v90, 0.6931472
    %v92 = vlog2.pop %v86
    %v93 = vmul.f32 %v92, 0.6931472
    %v94 = vlog2.pop %v87
    %v95 = vmul.f32 %v94, 0.6931472
    %v96 = vsub.f32 1.0, %v80
    %v97 = vsub.f32 1.0, %v81
    %v98 = vsub.f32 1.0, %v82
    %v99 = vsub.f32 1.0, %v83
    %v100 = vmul.f32 %v96, %v96
    %v101 = vmul.f32 %v97, %v97
    %v102 = vmul.f32 %v98, %v98
    %v103 = vmul.f32 %v99, %v99
    %v104 = vmul.f32 %v100, %v100
    %v105 = vmul.f32 %v101, %v101
    %v106 = vmul.f32 %v102, %v102
    %v107 = vmul.f32 %v103, %v103
    %v108 = vsel %vm48, %v96, %v104
    %v109 = vsel %vm49, %v97, %v105
    %v110 = vsel %vm50, %v98, %v106
    %v111 = vsel %vm51, %v99, %v107
    %v112 = vmul.f32 %v89, %v108
    %v113 = vmul.f32 %v91, %v109
    %v114 = vmul.f32 %v93, %v110
    %v115 = vmul.f32 %v95, %v111
    %v116 = vadd.f32 %v112, %v114
    %v117 = vadd.f32 %v113, %v115
    %v118 = vadd.f32 %v116, %v117
    %119 = vst [vmem:[#allocation7] sm:$0xff] %v118
    // Predicated region
    $region18: #{tpu_custom_call.1} parent=1 // pred_check
      _
    $region19: #{tpu_custom_call.1} parent=1 // pred_check_branch
      %121 = sbr.rel (0) target = $region21
    $region20: #{tpu_custom_call.1} parent=1 // pred_region
      %s123 = ssub.s32 128, 128
      %124 = vsyncadd [#allocation4], %s123
      %s126 = sshll.u32 [#allocation7], 4
      %s127 = int_to_ptr.vmem [resolvable:$true] %s126
      %129 = dma.vmem_to_hbm [thread:$0]  %s127, 128, %s2, [#allocation4]
    $region21: #{tpu_custom_call.1} parent=1 // pred_fallthru
      _
    // Predicated region
    $region22: #{tpu_custom_call.1} parent=1 // pred_check
      _
    $region23: #{tpu_custom_call.1} parent=1 // pred_check_branch
      %131 = sbr.rel (0) target = $region25
    $region24: #{tpu_custom_call.1} parent=1 // pred_region
      %132 = dma.done [#allocation4], 128
    $region25: #{tpu_custom_call.1} parent=1 // pred_fallthru
      _
    %133 = vsyncpa [#allocation3], 1
    %134 = vsyncpa [#allocation6], 1
    %135 = vsyncpa [#allocation4], 1

</llo_original>
